<compile_context>
chip_gen: v5e
topology: v5e:2x2
jax: 0.10.0
libtpu: 0.0.40
codegen_flags: <defaults>
</compile_context>

<pallas_src>
import functools
import math

import jax
import jax.numpy as jnp
from jax.experimental import pallas as pl
from jax.experimental.pallas import tpu as pltpu


# --------------------------------------------------------------------------
# Stage 1: per-pixel channel mean and max   (B, C, HW) -> (B, 2, HW)
# --------------------------------------------------------------------------
def _channel_mean_max_kernel(x_ref, o_ref, sum_sc, max_sc, *, inv_c: float):
    # x_ref:  VMEM (1, TILE_C, TILE_F), native dtype
    # o_ref:  VMEM (1, 2, TILE_F)
    # sum_sc, max_sc: VMEM (1, TILE_F) float32 accumulators
    c_idx = pl.program_id(2)

    @pl.when(c_idx == 0)
    def _():
        sum_sc[...] = jnp.zeros_like(sum_sc)
        max_sc[...] = jnp.full_like(max_sc, -jnp.inf)

    xb = x_ref[0]                                              # (TILE_C, TILE_F)
    # Accumulate in f32 without materializing an f32 copy of the whole block.
    sum_sc[...] += jnp.sum(xb, axis=0, keepdims=True, dtype=jnp.float32)
    max_sc[...] = jnp.maximum(
        max_sc[...], jnp.max(xb, axis=0, keepdims=True).astype(jnp.float32))

    @pl.when(c_idx == pl.num_programs(2) - 1)
    def _():
        # One fused (2, TILE_F) store (mean row, max row).
        o_ref[0] = jnp.concatenate(
            [sum_sc[...] * inv_c, max_sc[...]], axis=0).astype(o_ref.dtype)


def _pick_tiles(C: int, HW: int, elem_bytes: int):
    """Choose (tile_f, tile_c) so one input block stays <= ~10 MiB.

    Prefers a full-C block (single-pass reduction).  For very large C the
    channel axis is tiled as well (reduction grid axis); tile_c is kept a
    divisor of C so no garbage rows enter the max/sum."""
    budget = 10 * 1024 * 1024                       # per double-buffered buffer
    tf = (budget // max(1, C * elem_bytes)) // 128 * 128
    if tf >= 128:
        return (HW if tf >= HW else int(tf)), C     # full-dim or 128-aligned
    # Channel-tiled path (C in the thousands).
    tf = 128 if HW > 128 else HW
    tc = (budget // max(1, tf * elem_bytes)) // 8 * 8
    tc = max(8, min(C, int(tc)))
    while tc > 8 and C % tc != 0:
        tc -= 8
    if C % tc != 0:
        tc = C                                      # last resort: correctness first
    return tf, tc


# --------------------------------------------------------------------------
# Stage 2: 2 -> 1 channel k x k "SAME" conv (no bias) on the tiny maps
# --------------------------------------------------------------------------
def _conv2to1_kernel(w_ref, m_ref, o_ref, pad_sc, *, H: int, W: int, KS: int):
    # w_ref:  SMEM (2*KS*KS,) f32         m_ref: VMEM (1, 2, H, W)
    # o_ref:  VMEM (1, 1, H, W)           pad_sc: VMEM (2, H+2p, W+2p) f32
    pad = (KS - 1) // 2
    # In-kernel zero padding (replaces the previous XLA jnp.pad round-trip).
    pad_sc[...] = jnp.zeros_like(pad_sc)
    pad_sc[:, pad:pad + H, pad:pad + W] = m_ref[0].astype(jnp.float32)

    acc = jnp.zeros((H, W), jnp.float32)
    for c in range(2):
        for dx in range(KS):
            # Lane shift done once per (c, dx) and reused for all dy offsets.
            col = pad_sc[c, :, dx:dx + W]                       # (H+2p, W)
            for dy in range(KS):
                w = w_ref[(c * KS + dy) * KS + dx]              # scalar from SMEM
                acc = acc + w * col[dy:dy + H, :]               # cheap sublane slice
    o_ref[0, 0] = acc.astype(o_ref.dtype)


# --------------------------------------------------------------------------
# Wrapper
# --------------------------------------------------------------------------
def spatial_attention_forward(x, weight):
    """x: (B, C, H, W); weight: (1, 2, KS, KS) -> (B, 1, H, W)."""
    B, C, H, W = x.shape
    O, I, KH, KW = weight.shape
    assert O == 1 and I == 2 and KH == KW, "weight must be (1, 2, k, k)"
    KS = KH
    pad = (KS - 1) // 2
    HW = H * W

    # ---- Stage 1: lane-dense channel reduction, pipelined over (B, F, C) tiles.
    xr = x.reshape(B, C, HW)
    tile_f, tile_c = _pick_tiles(C, HW, x.dtype.itemsize)
    n_f = pl.cdiv(HW, tile_f)
    n_c = pl.cdiv(C, tile_c)
    maps_dtype = x.dtype if x.dtype == jnp.bfloat16 else jnp.float32

    maps = pl.pallas_call(
        functools.partial(_channel_mean_max_kernel, inv_c=1.0 / C),
        out_shape=jax.ShapeDtypeStruct((B, 2, HW), maps_dtype),
        grid=(B, n_f, n_c),
        in_specs=[pl.BlockSpec((1, tile_c, tile_f), lambda b, f, c: (b, c, f))],
        out_specs=pl.BlockSpec((1, 2, tile_f), lambda b, f, c: (b, 0, f)),
        scratch_shapes=[pltpu.VMEM((1, tile_f), jnp.float32),
                        pltpu.VMEM((1, tile_f), jnp.float32)],
        compiler_params=pltpu.CompilerParams(
            dimension_semantics=("parallel", "parallel", "arbitrary"),
            vmem_limit_bytes=32 * 1024 * 1024),
    )(xr)

    # ---- Stage 2: tiny 2->1 conv with in-kernel zero padding.
    maps4 = maps.reshape(B, 2, H, W)
    Hp, Wp = H + 2 * pad, W + 2 * pad
    w_flat = weight.astype(jnp.float32).reshape(-1)            # (2*KS*KS,)

    out = pl.pallas_call(
        functools.partial(_conv2to1_kernel, H=H, W=W, KS=KS),
        out_shape=jax.ShapeDtypeStruct((B, 1, H, W), x.dtype),
        grid=(B,),
        in_specs=[
            pl.BlockSpec(memory_space=pltpu.MemorySpace.SMEM),      # conv weights
            pl.BlockSpec((1, 2, H, W), lambda b: (b, 0, 0, 0)),
        ],
        out_specs=pl.BlockSpec((1, 1, H, W), lambda b: (b, 0, 0, 0)),
        scratch_shapes=[pltpu.VMEM((2, Hp, Wp), jnp.float32)],
        compiler_params=pltpu.CompilerParams(
            dimension_semantics=("parallel",)),
    )(w_flat, maps4)
    return out


class SpatialAttention:
    """Mirror of the PyTorch SpatialAttention module (forward only)."""

    def __init__(self, kernel_size: int = 3, *, key=None, dtype=jnp.float32):
        assert kernel_size in (3, 7), "kernel size must be 3 or 7"
        self.kernel_size = kernel_size
        if key is None:
            key = jax.random.PRNGKey(0)
        fan_in = 2 * kernel_size * kernel_size
        bound = 1.0 / math.sqrt(fan_in)          # nn.Conv2d default init range
        self.weight = jax.random.uniform(
            key, (1, 2, kernel_size, kernel_size), dtype=dtype,
            minval=-bound, maxval=bound)

    def __call__(self, x):
        return spatial_attention_forward(x, self.weight)


if __name__ == "__main__":
    key = jax.random.PRNGKey(0)
    kx, kw = jax.random.split(key)
    B, C, H, W = 2, 4, 16, 16
    x = jax.random.normal(kx, (B, C, H, W), dtype=jnp.float32)

    mod = SpatialAttention(kernel_size=3, key=kw)
    y = jax.block_until_ready(mod(x))
    assert y.shape == (B, 1, H, W)

    # Pure-JAX reference of the PyTorch forward.
    p = (mod.kernel_size - 1) // 2
    avg = jnp.mean(x, axis=1, keepdims=True)
    mx = jnp.max(x, axis=1, keepdims=True)
    cat = jnp.concatenate([avg, mx], axis=1)
    ref = jax.lax.conv_general_dilated(
        cat, mod.weight, window_strides=(1, 1), padding=((p, p), (p, p)),
        dimension_numbers=("NCHW", "OIHW", "NCHW"),
        precision=jax.lax.Precision.HIGHEST)
    err = float(jnp.max(jnp.abs(y - ref)))
    assert err < 1e-3, f"mismatch vs reference: max abs err = {err}"

    print("KERNEL_OK")
</pallas_src>

<mosaic_0001>
module attributes {stable_mosaic.version = 11 : i64} {
  func.func @_channel_mean_max_kernel(%arg0: i32, %arg1: i32, %arg2: i32, %arg3: memref<1x4x256xf32, #tpu.memory_space<vmem>>, %arg4: memref<1x2x256xf32, #tpu.memory_space<vmem>>, %arg5: memref<1x256xf32, #tpu.memory_space<vmem>>, %arg6: memref<1x256xf32, #tpu.memory_space<vmem>>) attributes {dimension_semantics = [#tpu.dimension_semantics<parallel>, #tpu.dimension_semantics<parallel>, #tpu.dimension_semantics<arbitrary>], iteration_bounds = array<i64: 2, 1, 1>, scalar_prefetch = 0 : i64, scratch_operands = 2 : i64, tpu.core_type = #tpu.core_type<tc>, window_params = [{transform_indices = @transform_0, window_bounds = array<i64: 1, 4, 256>}, {transform_indices = @transform_1, window_bounds = array<i64: 1, 2, 256>}]} {
    %c0_i32 = arith.constant 0 : i32
    %0 = arith.cmpi eq, %arg2, %c0_i32 : i32
    %1 = arith.extui %0 : i1 to i32
    %c0_i32_0 = arith.constant 0 : i32
    %2 = arith.cmpi ne, %1, %c0_i32_0 : i32
    scf.if %2 {
      %cst_14 = arith.constant 0.000000e+00 : f32
      %18 = vector.broadcast %cst_14 : f32 to vector<1x256xf32>
      %c0_15 = arith.constant 0 : index
      %c0_16 = arith.constant 0 : index
      %19 = vector.load %arg5[%c0_15, %c0_16] : memref<1x256xf32, #tpu.memory_space<vmem>>, vector<1x256xf32>
      tpu.vector_store %arg5[%c0_15, %c0_16], %18 {strides = array<i32>} : memref<1x256xf32, #tpu.memory_space<vmem>>, vector<1x256xf32>,
      %cst_17 = arith.constant 0xFF800000 : f32
      %20 = vector.broadcast %cst_17 : f32 to vector<1x256xf32>
      %c0_18 = arith.constant 0 : index
      %c0_19 = arith.constant 0 : index
      %21 = vector.load %arg6[%c0_18, %c0_19] : memref<1x256xf32, #tpu.memory_space<vmem>>, vector<1x256xf32>
      tpu.vector_store %arg6[%c0_18, %c0_19], %20 {strides = array<i32>} : memref<1x256xf32, #tpu.memory_space<vmem>>, vector<1x256xf32>,
    } else {
    }
    %c0 = arith.constant 0 : index
    %c0_1 = arith.constant 0 : index
    %c0_2 = arith.constant 0 : index
    %3 = vector.load %arg3[%c0, %c0_1, %c0_2] : memref<1x4x256xf32, #tpu.memory_space<vmem>>, vector<1x4x256xf32>
    %4 = vector.shape_cast %3 : vector<1x4x256xf32> to vector<4x256xf32>
    %c0_3 = arith.constant 0 : index
    %c0_4 = arith.constant 0 : index
    %5 = vector.load %arg5[%c0_3, %c0_4] : memref<1x256xf32, #tpu.memory_space<vmem>>, vector<1x256xf32>
    %cst = arith.constant dense<0.000000e+00> : vector<256xf32>
    %6 = vector.multi_reduction <add>, %4, %cst [0] : vector<4x256xf32> to vector<256xf32>
    %7 = vector.shape_cast %6 : vector<256xf32> to vector<1x256xf32>
    %8 = arith.addf %5, %7 : vector<1x256xf32>
    %c0_5 = arith.constant 0 : index
    %c0_6 = arith.constant 0 : index
    %9 = vector.load %arg5[%c0_5, %c0_6] : memref<1x256xf32, #tpu.memory_space<vmem>>, vector<1x256xf32>
    tpu.vector_store %arg5[%c0_5, %c0_6], %8 {strides = array<i32>} : memref<1x256xf32, #tpu.memory_space<vmem>>, vector<1x256xf32>,
    %c0_7 = arith.constant 0 : index
    %c0_8 = arith.constant 0 : index
    %10 = vector.load %arg6[%c0_7, %c0_8] : memref<1x256xf32, #tpu.memory_space<vmem>>, vector<1x256xf32>
    %cst_9 = arith.constant dense<0xFF800000> : vector<256xf32>
    %11 = vector.multi_reduction <maximumf>, %4, %cst_9 [0] : vector<4x256xf32> to vector<256xf32>
    %12 = vector.shape_cast %11 : vector<256xf32> to vector<1x256xf32>
    %13 = arith.maximumf %10, %12 : vector<1x256xf32>
    %c0_10 = arith.constant 0 : index
    %c0_11 = arith.constant 0 : index
    %14 = vector.load %arg6[%c0_10, %c0_11] : memref<1x256xf32, #tpu.memory_space<vmem>>, vector<1x256xf32>
    tpu.vector_store %arg6[%c0_10, %c0_11], %13 {strides = array<i32>} : memref<1x256xf32, #tpu.memory_space<vmem>>, vector<1x256xf32>,
    %c0_i32_12 = arith.constant 0 : i32
    %15 = arith.cmpi eq, %arg2, %c0_i32_12 : i32
    %16 = arith.extui %15 : i1 to i32
    %c0_i32_13 = arith.constant 0 : i32
    %17 = arith.cmpi ne, %16, %c0_i32_13 : i32
    scf.if %17 {
      %c0_14 = arith.constant 0 : index
      %c0_15 = arith.constant 0 : index
      %18 = vector.load %arg5[%c0_14, %c0_15] : memref<1x256xf32, #tpu.memory_space<vmem>>, vector<1x256xf32>
      %cst_16 = arith.constant 2.500000e-01 : f32
      %19 = vector.broadcast %cst_16 : f32 to vector<1x256xf32>
      %20 = arith.mulf %18, %19 : vector<1x256xf32>
      %c0_17 = arith.constant 0 : index
      %c0_18 = arith.constant 0 : index
      %21 = vector.load %arg6[%c0_17, %c0_18] : memref<1x256xf32, #tpu.memory_space<vmem>>, vector<1x256xf32>
      %22 = tpu.concatenate %20, %21 in 0 : vector<1x256xf32>, vector<1x256xf32> -> vector<2x256xf32>
      %c0_19 = arith.constant 0 : index
      %c0_20 = arith.constant 0 : index
      %c0_21 = arith.constant 0 : index
      %23 = vector.load %arg4[%c0_19, %c0_20, %c0_21] : memref<1x2x256xf32, #tpu.memory_space<vmem>>, vector<1x2x256xf32>
      %24 = vector.shape_cast %23 : vector<1x2x256xf32> to vector<2x256xf32>
      %25 = vector.shape_cast %22 : vector<2x256xf32> to vector<1x2x256xf32>
      tpu.vector_store %arg4[%c0_19, %c0_20, %c0_21], %25 {strides = array<i32>} : memref<1x2x256xf32, #tpu.memory_space<vmem>>, vector<1x2x256xf32>,
    } else {
    }
    return
  }
  func.func @transform_0(%arg0: i32, %arg1: i32, %arg2: i32) -> (i32, i32, i32) {
    %c0_i32 = arith.constant 0 : i32
    return %arg0, %arg2, %arg1 : i32, i32, i32
  }
  func.func @transform_1(%arg0: i32, %arg1: i32, %arg2: i32) -> (i32, i32, i32) {
    %c0_i32 = arith.constant 0 : i32
    %c0_i32_0 = arith.constant 0 : i32
    return %arg0, %c0_i32, %arg1 : i32, i32, i32
  }
}

</mosaic_0001>

<llo_original>
// kernel: tpu_custom_call.1
$region0: #{tpu_custom_call.1}
  #allocation0 [shape = 'u32[]', space=smem, size = 0x4, offset = 0x4, fixed_abs, tag = 'smem constant byte address 0x4 - core index']
  #allocation1 [shape = 'u32[72,128]{1,0:T(1,128)}', space=vmem, size = 0x9000, scoped, tag = 'internal scratch']
  #allocation2 [shape = 'f32[1,256]{1,0:T(1,128)}', space=vmem, size = 0x400, scoped, tag = 'scratch operand']
  #allocation3 [shape = 'f32[1,256]{1,0:T(1,128)}', space=vmem, size = 0x400, scoped, tag = 'scratch operand']
  %s0 = inlined_call_operand.hbm [shape: f32[2,4,256], index: 0, kind: input, shape index: {}]
  %s1 = inlined_call_operand.hbm [shape: f32[2,2,256], index: 1, kind: output, shape index: {}]
  %s2 = sld [smem:[#allocation0]]
  $region49: #{tpu_custom_call.1} parent=0
    _
  %s4 = ssub.s32 1, %s2
  %s5 = scalar_select 0, %s4, %s2
  $region1: #{tpu_custom_call.1} parent=0
    #allocation4 [shape = 'u8[8192]{0}', space=vmem, size = 0x2000, scoped, tag = 'input window, operand 0']
    #allocation5 [shape = 's32[2]{0}', space=sflag, size = 0x8, scoped, tag = 'scoped memory for tpu_custom_call.1']
    #allocation6 [shape = 's32[2]{0}', space=sflag, size = 0x8, scoped, tag = 'scoped memory for tpu_custom_call.1']
    #allocation7 [shape = 'u8[4096]{0}', space=vmem, size = 0x1000, scoped, tag = 'output window, operand 0']
    %6 = vsyncpa [#allocation5], 0
    %s7 = scalar_lea.sflag [#allocation5], 1
    %8 = vsyncpa %s7, 0
    %9 = vsyncpa [#allocation6], 0
    %s10 = scalar_lea.sflag [#allocation6], 1
    %11 = vsyncpa %s10, 0
    loop: start=0, step=1, limit=4
    $region2: #{tpu_custom_call.1} parent=1 // loop_pre_header
      _
    $region3: #{tpu_custom_call.1} parent=1 // loop_header
      %s13 = sphi 0, %s17
      %p14 = scmp.ge.s32.totalorder %s13, 4
      %s20 = sphi 0, %s39
      %s21 = sphi 0, %s35
      %s22 = sphi 0, %s31
      %s23 = sphi 0, %s20
      %s24 = sphi 0, %s21
      %s25 = sphi 0, %s22
      %s26 = sphi 0, %s23
      %s27 = sphi 0, %s24
      %s28 = sphi 0, %s25
      %s46 = sphi 0, %s48
      %s49 = sphi 0, %s46
      %s50 = sphi 0, %s49
      %s66 = sphi 0, %s50
      %s74 = sphi 0, %s76
      %s77 = sphi 0, %s74
      %s78 = sphi 0, %s77
      %s94 = sphi 0, %s78
    $region4: #{tpu_custom_call.1} parent=1 // loop_header_branch
      %16 = sbr.rel (%p14) target = $region8
    $region5: #{tpu_custom_call.1} parent=1 // loop_body
      %s18 = ssub.s32 %s13, 1
      %s19 = ssub.s32 %s13, 2
      %s29 = sadd.s32 1, %s22
      %p30 = scmp.ge.s32.totalorder %s29, 1
      %s31 = scalar_select %p30, 0, %s29
      %s32 = sadd.s32 1, %s21
      %s33 = scalar_select %p30, %s32, %s21
      %p34 = scmp.ge.s32.totalorder %s33, 1
      %s35 = scalar_select %p34, 0, %s33
      %s36 = sadd.s32 1, %s20
      %s37 = scalar_select %p34, %s36, %s20
      %p38 = scmp.ge.s32.totalorder %s37, 2
      %s39 = scalar_select %p38, 0, %s37
      %s40 = ssub.s32 %s20, %s39
      %s41 = ssub.s32 %s22, %s31
      %s42 = sor.u32 %s40, %s41
      %s43 = ssub.s32 %s21, %s35
      %s44 = sor.u32 %s42, %s43
      %p45 = scmp.eq.s32.totalorder %s44, 0
      %s47 = sadd.s32 %s46, 1
      %s48 = scalar_select %p45, %s46, %s47
      %p51 = pneg %p45
      %p52 = scmp.eq.s32.totalorder %s13, 1
      %p53 = por %p51, %p52
      %p54 = scmp.ne.s32.totalorder %s46, %s49
      %p55 = scmp.eq.s32.totalorder %s13, 0
      %p56 = por %p54, %p55
      %p57 = scmp.ne.s32.totalorder %s46, %s49
      %p58 = scmp.eq.s32.totalorder %s18, 1
      %p59 = por %p57, %p58
      %p60 = scmp.ne.s32.totalorder %s49, %s50
      %p61 = scmp.eq.s32.totalorder %s18, 0
      %p62 = por %p60, %p61
      %p63 = scmp.ne.s32.totalorder %s49, %s50
      %p64 = scmp.eq.s32.totalorder %s19, 1
      %p65 = por %p63, %p64
      %p67 = scmp.ne.s32.totalorder %s50, %s66
      %p68 = scmp.eq.s32.totalorder %s19, 0
      %p69 = por %p67, %p68
      %s70 = ssub.s32 %s20, %s39
      %s71 = ssub.s32 %s21, %s35
      %s72 = sor.u32 %s70, %s71
      %p73 = scmp.eq.s32.totalorder %s72, 0
      %s75 = sadd.s32 %s74, 1
      %s76 = scalar_select %p73, %s74, %s75
      %p79 = pneg %p73
      %p80 = scmp.eq.s32.totalorder %s13, 1
      %p81 = por %p79, %p80
      %p82 = scmp.ne.s32.totalorder %s74, %s77
      %p83 = scmp.eq.s32.totalorder %s13, 0
      %p84 = por %p82, %p83
      %p85 = scmp.ne.s32.totalorder %s74, %s77
      %p86 = scmp.eq.s32.totalorder %s18, 1
      %p87 = por %p85, %p86
      %p88 = scmp.ne.s32.totalorder %s77, %s78
      %p89 = scmp.eq.s32.totalorder %s18, 0
      %p90 = por %p88, %p89
      %p91 = scmp.ne.s32.totalorder %s77, %s78
      %p92 = scmp.eq.s32.totalorder %s19, 1
      %p93 = por %p91, %p92
      %p95 = scmp.ne.s32.totalorder %s78, %s94
      %p96 = scmp.eq.s32.totalorder %s19, 0
      %p97 = por %p95, %p96
      %p98 = scmp.le.s32.totalorder 1, %s13
      %p99 = scmp.lt.s32.totalorder %s13, 3
      %p100 = pnand %p98, %p99
      %p101 = pneg %p100
      // Predicated region
      $region9: #{tpu_custom_call.1} parent=5 // pred_check
        _
      $region10: #{tpu_custom_call.1} parent=5 // pred_check_branch
        %103 = sbr.rel (%p100) target = $region12
      $region11: #{tpu_custom_call.1} parent=5 // pred_region
        %s104 = ssub.s32 %s13, 1
      $region12: #{tpu_custom_call.1} parent=5 // pred_fallthru
        _
      %p105 = scmp.lt.s32.totalorder %s13, 2
      // Predicated region
      $region13: #{tpu_custom_call.1} parent=5 // pred_check
        %p106 = pneg %p105
      $region14: #{tpu_custom_call.1} parent=5 // pred_check_branch
        %108 = sbr.rel (%p106) target = $region16
      $region15: #{tpu_custom_call.1} parent=5 // pred_region
        // Predicated region
        $region17: #{tpu_custom_call.1} parent=15 // pred_check
          %p109 = pneg %p56
        $region18: #{tpu_custom_call.1} parent=15 // pred_check_branch
          %111 = sbr.rel (%p109) target = $region20
        $region19: #{tpu_custom_call.1} parent=15 // pred_region
          %s112 = sand.u32 %s46, 1
          %s113 = scalar_lea.sflag [#allocation5], %s112
          %s114 = sand.u32 %s46, 1
          %s115 = smul.addr %s114, 8
          %s116 = scalar_lea.vmem [#allocation4], %s115
          %s117 = smul.u32 2, %s21
          %119 = vsyncadd %s113, 0
          %s120 = smul.addr %s22, 2
          %s121 = sadd.s32 %s117, %s120
          %s122 = smul.addr %s20, 2
          %s123 = sadd.s32 %s121, %s122
          %s124 = smul.addr %s123, 4
          %s125 = scalar_lea.hbm %s0, %s124
          %s127 = sshll.u32 %s125, 4
          %s128 = int_to_ptr.hbm [resolvable:$true] %s127
          %s129 = sshll.u32 %s116, 4
          %s130 = int_to_ptr.vmem [resolvable:$true] %s129
          %132 = dma.hbm_to_vmem [thread:$0]  %s128, 128, %s130, %s113
        $region20: #{tpu_custom_call.1} parent=15 // pred_fallthru
          _
      $region16: #{tpu_custom_call.1} parent=5 // pred_fallthru
        _
      %p133 = scmp.le.s32.totalorder 1, %s13
      %p134 = scmp.lt.s32.totalorder %s13, 3
      %p135 = pnand %p133, %p134
      %p136 = pneg %p135
      // Predicated region
      $region21: #{tpu_custom_call.1} parent=5 // pred_check
        _
      $region22: #{tpu_custom_call.1} parent=5 // pred_check_branch
        %138 = sbr.rel (%p135) target = $region24
      $region23: #{tpu_custom_call.1} parent=5 // pred_region
        %s139 = ssub.s32 %s13, 1
        %s140 = sand.u32 %s49, 1
        %s141 = scalar_lea.sflag [#allocation5], %s140
        %s142 = sand.u32 %s49, 1
        %s143 = smul.addr %s142, 8
        %s144 = scalar_lea.vmem [#allocation4], %s143
        // Predicated region
        $region25: #{tpu_custom_call.1} parent=23 // pred_check
          %p145 = pneg %p62
        $region26: #{tpu_custom_call.1} parent=23 // pred_check_branch
          %147 = sbr.rel (%p145) target = $region28
        $region27: #{tpu_custom_call.1} parent=23 // pred_region
          %149 = dma.done %s141, 128
        $region28: #{tpu_custom_call.1} parent=23 // pred_fallthru
          _
        %s150 = sand.u32 %s49, 1
        %s151 = scalar_lea.sflag [#allocation5], %s150
        %s152 = sand.u32 %s49, 1
        %s153 = smul.addr %s152, 8
        %s154 = scalar_lea.vmem [#allocation4], %s153
        %p155 = pneg %p62
        %p156 = pneg %p59
        %p157 = pneg %p90
        %p158 = pneg %p87
        %s159 = sand.u32 %s77, 1
        %s160 = scalar_lea.sflag [#allocation6], %s159
        %s161 = sand.u32 %s77, 1
        %s162 = smul.addr %s161, 4
        %s163 = scalar_lea.vmem [#allocation7], %s162
        %s164 = smul.u32 2, %s24
        %s165 = smul.u32 2, %s24
        %p166 = scmp.eq.s32.totalorder %s25, 0
        // Predicated region
        $region29: #{tpu_custom_call.1} parent=23 // pred_check
          %p167 = pneg %p166
        $region30: #{tpu_custom_call.1} parent=23 // pred_check_branch
          %169 = sbr.rel (%p167) target = $region32
        $region31: #{tpu_custom_call.1} parent=23 // pred_region
          %v170 = vlaneseq
          %vm171 = vcmp.ge.s32.totalorder %v170, 0
          %vm172 = vcmp.lt.s32.totalorder %v170, 256
          %vm173 = vmand %vm171, %vm172
          %174 = vst.msk [vmem:[#allocation2] sm:$0x3] %vm173, 0.0
          %175 = vst.msk [vmem:[#allocation3] sm:$0x3] %vm173, -inf
        $region32: #{tpu_custom_call.1} parent=23 // pred_fallthru
          _
        %v176 = vld [vmem:[%s144] sm:$0xff]
        %v177 = vld [vmem:[#allocation2] sm:$0x3]
        %179 = vst [vmem:[#allocation1] ss:$2 sm:$0xff] %v176
        %v180 = vld.sshfl [vmem:[#allocation1] sm:$0xff pattern:$0x75316420]
        %v181 = vld.sshfl [vmem:[#allocation1 + $0x8] sm:$0xff pattern:$0x75316420]
        %vm184 = vcmask 1043456
        %v185 = vsel %vm184, %v180, 0.0
        %v186 = vrot.slane %v185, 4
        %v187 = vadd.f32 %v185, %v186
        %v188 = vrot.slane %v187, 2
        %v189 = vadd.f32 %v187, %v188
        %v190 = vrot.slane %v189, 1
        %v191 = vadd.f32 %v189, %v190
        %v192 = vsel %vm184, %v181, 0.0
        %v193 = vrot.slane %v192, 4
        %v194 = vadd.f32 %v192, %v193
        %v195 = vrot.slane %v194, 2
        %v196 = vadd.f32 %v194, %v195
        %v197 = vrot.slane %v196, 1
        %v198 = vadd.f32 %v196, %v197
        %v201 = vrot.slane %v198, 7
        %vm202 = vcmask 1040384
        %v203 = vsel %vm202, %v191, %v201
        %v205 = vadd.f32 %v177, %v203
        %v206 = vlaneseq
        %vm207 = vcmp.ge.s32.totalorder %v206, 0
        %vm208 = vcmp.lt.s32.totalorder %v206, 256
        %vm209 = vmand %vm207, %vm208
        %210 = vst.msk [vmem:[#allocation2] sm:$0x3] %vm209, %v205
        %v211 = vld [vmem:[#allocation3] sm:$0x3]
        %212 = vst [vmem:[#allocation1] ss:$2 sm:$0xff] %v176
        %v213 = vld.sshfl [vmem:[#allocation1] sm:$0xff pattern:$0x75316420]
        %v214 = vld.sshfl [vmem:[#allocation1 + $0x8] sm:$0xff pattern:$0x75316420]
        %v217 = vsel %vm184, %v213, -inf
        %v218 = vrot.slane %v217, 4
        %v219 = vmax.f32 %v217, %v218
        %v220 = vrot.slane %v219, 2
        %v221 = vmax.f32 %v219, %v220
        %v222 = vrot.slane %v221, 1
        %v223 = vmax.f32 %v221, %v222
        %v224 = vsel %vm184, %v214, -inf
        %v225 = vrot.slane %v224, 4
        %v226 = vmax.f32 %v224, %v225
        %v227 = vrot.slane %v226, 2
        %v228 = vmax.f32 %v226, %v227
        %v229 = vrot.slane %v228, 1
        %v230 = vmax.f32 %v228, %v229
        %v233 = vrot.slane %v230, 7
        %v234 = vsel %vm202, %v223, %v233
        %v236 = vmax.f32 %v211, %v234
        %237 = vst.msk [vmem:[#allocation3] sm:$0x3] %vm209, %v236
        // Predicated region
        $region33: #{tpu_custom_call.1} parent=23 // pred_check
          %p238 = pneg %p166
        $region34: #{tpu_custom_call.1} parent=23 // pred_check_branch
          %240 = sbr.rel (%p238) target = $region36
        $region35: #{tpu_custom_call.1} parent=23 // pred_region
          %v241 = vld [vmem:[#allocation2] sm:$0x3]
          %v242 = vmul.f32 %v241, 0.25
          %v243 = vld [vmem:[#allocation3] sm:$0x3]
          %v245 = vperm.slane %v242, 0
          %v246 = vperm.slane %v242, 1
          %v250 = vperm.slane %v243, 0
          %v251 = vperm.slane %v243, 1
          %v254 = vsel %vm202, %v245, %v250
          %v255 = vsel %vm202, %v246, %v251
          %v258 = vrot.slane %v255, 6
          %vm259 = vcmask 1041408
          %v260 = vsel %vm259, %v254, %v258
          %262 = vst [vmem:[%s163] sm:$0xf] %v260
        $region36: #{tpu_custom_call.1} parent=23 // pred_fallthru
          _
        %s263 = sand.u32 %s77, 1
        %s264 = scalar_lea.sflag [#allocation6], %s263
        %s265 = sand.u32 %s77, 1
        %s266 = smul.addr %s265, 4
        %s267 = scalar_lea.vmem [#allocation7], %s266
        // Predicated region
        $region37: #{tpu_custom_call.1} parent=23 // pred_check
          %p268 = pneg %p87
        $region38: #{tpu_custom_call.1} parent=23 // pred_check_branch
          %270 = sbr.rel (%p268) target = $region40
        $region39: #{tpu_custom_call.1} parent=23 // pred_region
          %s271 = smul.u32 2, %s24
          %273 = vsyncadd %s264, 0
          %s274 = smul.addr %s23, 2
          %s275 = sadd.s32 %s271, %s274
          %s276 = smul.addr %s275, 2
          %s277 = scalar_lea.hbm %s1, %s276
          %s279 = sshll.u32 %s267, 4
          %s280 = int_to_ptr.vmem [resolvable:$true] %s279
          %s281 = sshll.u32 %s277, 4
          %s282 = int_to_ptr.hbm [resolvable:$true] %s281
          %284 = dma.vmem_to_hbm [thread:$0]  %s280, 64, %s282, %s264
        $region40: #{tpu_custom_call.1} parent=23 // pred_fallthru
          _
      $region24: #{tpu_custom_call.1} parent=5 // pred_fallthru
        _
      %p285 = scmp.le.s32.totalorder 2, %s13
      // Predicated region
      $region41: #{tpu_custom_call.1} parent=5 // pred_check
        %p286 = pneg %p285
      $region42: #{tpu_custom_call.1} parent=5 // pred_check_branch
        %288 = sbr.rel (%p286) target = $region44
      $region43: #{tpu_custom_call.1} parent=5 // pred_region
        %s289 = ssub.s32 %s13, 2
        // Predicated region
        $region45: #{tpu_custom_call.1} parent=43 // pred_check
          %p290 = pneg %p93
        $region46: #{tpu_custom_call.1} parent=43 // pred_check_branch
          %292 = sbr.rel (%p290) target = $region48
        $region47: #{tpu_custom_call.1} parent=43 // pred_region
          %s293 = sand.u32 %s78, 1
          %s294 = scalar_lea.sflag [#allocation6], %s293
          %s295 = sand.u32 %s78, 1
          %s296 = smul.addr %s295, 4
          %s297 = scalar_lea.vmem [#allocation7], %s296
          %299 = dma.done %s294, 64
        $region48: #{tpu_custom_call.1} parent=43 // pred_fallthru
          _
      $region44: #{tpu_custom_call.1} parent=5 // pred_fallthru
        _
    $region6: #{tpu_custom_call.1} parent=1 // loop_footer
      %s17 = sadd.s32 1, %s13
    $region7: #{tpu_custom_call.1} parent=1 // loop_footer_branch
      %12 = sbr.rel target = $region3
    $region8: #{tpu_custom_call.1} parent=1 // loop_exit
      _
    %300 = vsyncpa [#allocation5], 1
    %s301 = scalar_lea.sflag [#allocation5], 1
    %302 = vsyncpa %s301, 1
    %303 = vsyncpa [#allocation6], 1
    %s304 = scalar_lea.sflag [#allocation6], 1
    %305 = vsyncpa %s304, 1

</llo_original>
